<compile_context>
chip_gen: v7x
topology: tpu7x:2x2x1
jax: 0.10.0
libtpu: 0.0.40
codegen_flags: <defaults>
</compile_context>

<pallas_src>
import functools

import jax
import jax.numpy as jnp
from jax.experimental import pallas as pl
from jax.experimental.pallas import tpu as pltpu

_SUBLANE = 8
_EPS = 1e-5  # torch.nn.LayerNorm default


def _round_up(x, m):
    return ((x + m - 1) // m) * m


def critic_kernel(matmul_dtype,
                  state_ref, action_ref,
                  w1_ref, w2_ref, wa_ref,
                  vec1_ref, vec2_ref,
                  out_ref):
    """One batch tile of the Critic forward pass (no feature padding anywhere)."""

    def mm(x, w_ref):
        if matmul_dtype is not None:
            x = x.astype(matmul_dtype)          # weights were cast once on the host
        return jnp.dot(x, w_ref[...], preferred_element_type=jnp.float32)

    def layer_norm(x, gamma, beta):
        mu = jnp.mean(x, axis=-1, keepdims=True)
        d = x - mu
        var = jnp.mean(d * d, axis=-1, keepdims=True)
        return d * jax.lax.rsqrt(var + _EPS) * gamma + beta

    # Packed 1-D params (f32): vec1 = [b1; g1; be1], vec2 = [b2; g2; be2; ba; wq; bq_row]
    b1, g1, be1 = vec1_ref[0:1, :], vec1_ref[1:2, :], vec1_ref[2:3, :]
    b2, g2, be2 = vec2_ref[0:1, :], vec2_ref[1:2, :], vec2_ref[2:3, :]
    ba = vec2_ref[3:4, :]
    wq_row = vec2_ref[4:5, :]
    # bq is stored in lane 0 of the last row, remaining lanes are zero -> lane-sum == bq.
    bq = jnp.sum(vec2_ref[5:6, :], axis=-1, keepdims=True)

    state = state_ref[...]
    action = action_ref[...]

    # --- state branch: fc1 -> LayerNorm -> relu -> fc2 -> LayerNorm ---
    sv = mm(state, w1_ref) + b1
    sv = layer_norm(sv, g1, be1)
    sv = jnp.maximum(sv, 0.0)
    sv = mm(sv, w2_ref) + b2
    sv = layer_norm(sv, g2, be2)

    # --- action branch: action_value -> relu ---
    av = jnp.maximum(mm(action, wa_ref) + ba, 0.0)

    # --- fuse and q head (per-row reduction -> compact (tb, 1) output, all f32) ---
    sav = jnp.maximum(sv + av, 0.0)
    q = jnp.sum(sav * wq_row, axis=-1, keepdims=True) + bq
    out_ref[...] = q.astype(out_ref.dtype)


def critic_forward(state, action, params, *, block_b=512, matmul_dtype=jnp.bfloat16):
    """Critic forward. state: (B, input_dims), action: (B, n_actions) -> (B, 1) f32."""
    B, input_dims = state.shape
    n_actions = action.shape[1]
    fc1_dims = params["w1"].shape[1]
    fc2_dims = params["w2"].shape[1]
    f32 = jnp.float32

    # Batch tile: multiple of 8 rows, capped at block_b.  When the batch is large enough,
    # use at least two grid blocks so both v7x TensorCores get work.
    tb = min(block_b, _round_up(B, _SUBLANE))
    if B >= 2 * _SUBLANE:
        tb = min(tb, _round_up(pl.cdiv(B, 2), _SUBLANE))
    n_blocks = pl.cdiv(B, tb)

    # Weights: cast once on the host (bf16 -> native MXU, half the resident VMEM / DMA).
    wdt = f32 if matmul_dtype is None else matmul_dtype
    w1 = params["w1"].astype(wdt)              # (input_dims, fc1_dims)
    w2 = params["w2"].astype(wdt)              # (fc1_dims, fc2_dims)
    wa = params["wa"].astype(wdt)              # (n_actions, fc2_dims)

    # Pack the small 1-D parameters into two f32 slabs (one per feature width).
    def _rows(vs, width):
        rows = [jnp.asarray(v, f32).reshape(1, -1) for v in vs]
        rows = [jnp.pad(r, ((0, 0), (0, width - r.shape[1]))) for r in rows]
        return jnp.concatenate(rows, axis=0)

    vec1 = _rows([params["b1"], params["g1"], params["be1"]], fc1_dims)
    vec2 = _rows([params["b2"], params["g2"], params["be2"], params["ba"],
                  params["wq"].reshape(-1), params["bq"]], fc2_dims)

    kernel = functools.partial(critic_kernel, matmul_dtype)

    batch_spec = lambda w: pl.BlockSpec((tb, w), lambda i: (i, 0))
    resident = lambda shape: pl.BlockSpec(shape, lambda i: (0, 0))

    out = pl.pallas_call(
        kernel,
        out_shape=jax.ShapeDtypeStruct((B, 1), jnp.float32),
        grid=(n_blocks,),
        in_specs=[
            batch_spec(input_dims),     # state   (streamed, unpadded)
            batch_spec(n_actions),      # action  (streamed, unpadded)
            resident(w1.shape),         # w1      (VMEM-resident)
            resident(w2.shape),         # w2
            resident(wa.shape),         # wa
            resident(vec1.shape),       # [b1; g1; be1]
            resident(vec2.shape),       # [b2; g2; be2; ba; wq; bq]
        ],
        out_specs=batch_spec(1),        # compact (B, 1) q output
        compiler_params=pltpu.CompilerParams(
            dimension_semantics=("parallel",)),
    )(state, action, w1, w2, wa, vec1, vec2)

    return out


def critic_reference(state, action, params):
    """Pure-JAX reference mirroring the PyTorch forward (f32, highest matmul precision)."""
    hp = functools.partial(jnp.matmul, precision="highest")

    def ln(x, g, b):
        mu = jnp.mean(x, axis=-1, keepdims=True)
        var = jnp.mean((x - mu) ** 2, axis=-1, keepdims=True)
        return (x - mu) * jax.lax.rsqrt(var + _EPS) * g + b

    sv = hp(state, params["w1"]) + params["b1"]
    sv = ln(sv, params["g1"], params["be1"])
    sv = jnp.maximum(sv, 0.0)
    sv = hp(sv, params["w2"]) + params["b2"]
    sv = ln(sv, params["g2"], params["be2"])
    av = jnp.maximum(hp(action, params["wa"]) + params["ba"], 0.0)
    sav = jnp.maximum(sv + av, 0.0)
    return hp(sav, params["wq"]) + params["bq"]


def init_params(key, input_dims, fc1_dims, fc2_dims, n_actions):
    """Deterministic synthetic init mirroring the module's parameter shapes."""
    ks = jax.random.split(key, 8)
    f1 = 1.0 / jnp.sqrt(jnp.float32(fc1_dims))   # fc1.weight.size()[0] == fc1_dims
    f2 = 1.0 / jnp.sqrt(jnp.float32(fc2_dims))   # fc2.weight.size()[0] == fc2_dims
    fa = 1.0 / jnp.sqrt(jnp.float32(n_actions))  # default init for action_value
    f3 = 0.003
    u = lambda k, shape, lim: jax.random.uniform(k, shape, jnp.float32, -lim, lim)
    return {
        # Linear weights stored transposed: [in, out]
        "w1": u(ks[0], (input_dims, fc1_dims), f1),
        "b1": u(ks[1], (fc1_dims,), f1),
        "g1": jnp.ones((fc1_dims,), jnp.float32),    # LayerNorm(fc1_dims) weight
        "be1": jnp.zeros((fc1_dims,), jnp.float32),  # LayerNorm(fc1_dims) bias
        "w2": u(ks[2], (fc1_dims, fc2_dims), f2),
        "b2": u(ks[3], (fc2_dims,), f2),
        "g2": jnp.ones((fc2_dims,), jnp.float32),
        "be2": jnp.zeros((fc2_dims,), jnp.float32),
        "wa": u(ks[4], (n_actions, fc2_dims), fa),
        "ba": u(ks[5], (fc2_dims,), fa),
        "wq": u(ks[6], (fc2_dims, 1), f3),
        "bq": u(ks[7], (1,), f3),
    }


if __name__ == "__main__":
    key = jax.random.PRNGKey(0)
    B, input_dims, fc1_dims, fc2_dims, n_actions = 8, 16, 64, 32, 4

    k_s, k_a, k_p = jax.random.split(key, 3)
    state = jax.random.normal(k_s, (B, input_dims), jnp.float32)
    action = jax.random.normal(k_a, (B, n_actions), jnp.float32)
    params = init_params(k_p, input_dims, fc1_dims, fc2_dims, n_actions)

    ref = critic_reference(state, action, params)

    # f32 MXU operand path.
    out_f32 = critic_forward(state, action, params, matmul_dtype=None)
    jax.block_until_ready(out_f32)
    assert out_f32.shape == (B, 1)
    assert bool(jnp.allclose(out_f32, ref, atol=2e-3, rtol=5e-2)), "f32 path mismatch"

    # Default path: bf16 MXU operands, f32 accumulation / LayerNorm.
    out_bf16 = critic_forward(state, action, params)
    jax.block_until_ready(out_bf16)
    assert out_bf16.shape == (B, 1)
    assert bool(jnp.allclose(out_bf16, ref, atol=5e-3, rtol=5e-2)), "bf16 path mismatch"

    print("KERNEL_OK")
</pallas_src>

<mosaic_0001>
module attributes {stable_mosaic.version = 11 : i64} {
  func.func @critic_kernel(%arg0: i32, %arg1: memref<8x16xf32, #tpu.memory_space<vmem>>, %arg2: memref<8x4xf32, #tpu.memory_space<vmem>>, %arg3: memref<16x64xf32, #tpu.memory_space<vmem>>, %arg4: memref<64x32xf32, #tpu.memory_space<vmem>>, %arg5: memref<4x32xf32, #tpu.memory_space<vmem>>, %arg6: memref<3x64xf32, #tpu.memory_space<vmem>>, %arg7: memref<6x32xf32, #tpu.memory_space<vmem>>, %arg8: memref<8x1xf32, #tpu.memory_space<vmem>>) attributes {dimension_semantics = [#tpu.dimension_semantics<parallel>], iteration_bounds = array<i64: 1>, scalar_prefetch = 0 : i64, scratch_operands = 0 : i64, tpu.core_type = #tpu.core_type<tc>, window_params = [{transform_indices = @transform_0, window_bounds = array<i64: 8, 16>}, {transform_indices = @transform_1, window_bounds = array<i64: 8, 4>}, {pipeline_mode = #tpu.pipeline_mode<synchronous>, transform_indices = @transform_2, window_bounds = array<i64: 16, 64>}, {pipeline_mode = #tpu.pipeline_mode<synchronous>, transform_indices = @transform_3, window_bounds = array<i64: 64, 32>}, {pipeline_mode = #tpu.pipeline_mode<synchronous>, transform_indices = @transform_4, window_bounds = array<i64: 4, 32>}, {pipeline_mode = #tpu.pipeline_mode<synchronous>, transform_indices = @transform_5, window_bounds = array<i64: 3, 64>}, {pipeline_mode = #tpu.pipeline_mode<synchronous>, transform_indices = @transform_6, window_bounds = array<i64: 6, 32>}, {transform_indices = @transform_7, window_bounds = array<i64: 8, 1>}]} {
    %c0 = arith.constant 0 : index
    %c0_0 = arith.constant 0 : index
    %0 = vector.load %arg6[%c0, %c0_0] : memref<3x64xf32, #tpu.memory_space<vmem>>, vector<1x64xf32>
    %c1 = arith.constant 1 : index
    %c0_1 = arith.constant 0 : index
    %1 = vector.load %arg6[%c1, %c0_1] : memref<3x64xf32, #tpu.memory_space<vmem>>, vector<1x64xf32>
    %c2 = arith.constant 2 : index
    %c0_2 = arith.constant 0 : index
    %2 = vector.load %arg6[%c2, %c0_2] : memref<3x64xf32, #tpu.memory_space<vmem>>, vector<1x64xf32>
    %c0_3 = arith.constant 0 : index
    %c0_4 = arith.constant 0 : index
    %3 = vector.load %arg7[%c0_3, %c0_4] : memref<6x32xf32, #tpu.memory_space<vmem>>, vector<1x32xf32>
    %c1_5 = arith.constant 1 : index
    %c0_6 = arith.constant 0 : index
    %4 = vector.load %arg7[%c1_5, %c0_6] : memref<6x32xf32, #tpu.memory_space<vmem>>, vector<1x32xf32>
    %c2_7 = arith.constant 2 : index
    %c0_8 = arith.constant 0 : index
    %5 = vector.load %arg7[%c2_7, %c0_8] : memref<6x32xf32, #tpu.memory_space<vmem>>, vector<1x32xf32>
    %c3 = arith.constant 3 : index
    %c0_9 = arith.constant 0 : index
    %6 = vector.load %arg7[%c3, %c0_9] : memref<6x32xf32, #tpu.memory_space<vmem>>, vector<1x32xf32>
    %c4 = arith.constant 4 : index
    %c0_10 = arith.constant 0 : index
    %7 = vector.load %arg7[%c4, %c0_10] : memref<6x32xf32, #tpu.memory_space<vmem>>, vector<1x32xf32>
    %c5 = arith.constant 5 : index
    %c0_11 = arith.constant 0 : index
    %8 = vector.load %arg7[%c5, %c0_11] : memref<6x32xf32, #tpu.memory_space<vmem>>, vector<1x32xf32>
    %cst = arith.constant dense<0.000000e+00> : vector<1xf32>
    %9 = vector.multi_reduction <add>, %8, %cst [1] : vector<1x32xf32> to vector<1xf32>
    %10 = vector.shape_cast %9 : vector<1xf32> to vector<1x1xf32>
    %c0_12 = arith.constant 0 : index
    %c0_13 = arith.constant 0 : index
    %11 = vector.load %arg1[%c0_12, %c0_13] : memref<8x16xf32, #tpu.memory_space<vmem>>, vector<8x16xf32>
    %c0_14 = arith.constant 0 : index
    %c0_15 = arith.constant 0 : index
    %12 = vector.load %arg2[%c0_14, %c0_15] : memref<8x4xf32, #tpu.memory_space<vmem>>, vector<8x4xf32>
    %c0_16 = arith.constant 0 : index
    %c0_17 = arith.constant 0 : index
    %13 = vector.load %arg3[%c0_16, %c0_17] : memref<16x64xf32, #tpu.memory_space<vmem>>, vector<16x64xf32>
    %cst_18 = arith.constant dense<0.000000e+00> : vector<8x64xf32>
    %14 = tpu.matmul %11, %13, %cst_18 {dimension_numbers = #tpu.dot_dimension_numbers<[1], [0], [0], [1], [0, 0, 1, 1], [], []>} : vector<8x16xf32>, vector<16x64xf32>, vector<8x64xf32> -> vector<8x64xf32>
    %15 = vector.broadcast %0 : vector<1x64xf32> to vector<8x64xf32>
    %16 = arith.addf %14, %15 : vector<8x64xf32>
    %cst_19 = arith.constant dense<0.000000e+00> : vector<8xf32>
    %17 = vector.multi_reduction <add>, %16, %cst_19 [1] : vector<8x64xf32> to vector<8xf32>
    %18 = vector.shape_cast %17 : vector<8xf32> to vector<8x1xf32>
    %cst_20 = arith.constant 6.400000e+01 : f32
    %19 = vector.broadcast %cst_20 : f32 to vector<8x1xf32>
    %20 = arith.divf %18, %19 : vector<8x1xf32>
    %21 = vector.broadcast %20 : vector<8x1xf32> to vector<8x64xf32>
    %22 = arith.subf %16, %21 : vector<8x64xf32>
    %23 = arith.mulf %22, %22 : vector<8x64xf32>
    %cst_21 = arith.constant dense<0.000000e+00> : vector<8xf32>
    %24 = vector.multi_reduction <add>, %23, %cst_21 [1] : vector<8x64xf32> to vector<8xf32>
    %25 = vector.shape_cast %24 : vector<8xf32> to vector<8x1xf32>
    %cst_22 = arith.constant 6.400000e+01 : f32
    %26 = vector.broadcast %cst_22 : f32 to vector<8x1xf32>
    %27 = arith.divf %25, %26 : vector<8x1xf32>
    %cst_23 = arith.constant 9.99999974E-6 : f32
    %28 = vector.broadcast %cst_23 : f32 to vector<8x1xf32>
    %29 = arith.addf %27, %28 : vector<8x1xf32>
    %30 = math.rsqrt %29 : vector<8x1xf32>
    %31 = vector.broadcast %30 : vector<8x1xf32> to vector<8x64xf32>
    %32 = arith.mulf %22, %31 : vector<8x64xf32>
    %33 = vector.broadcast %1 : vector<1x64xf32> to vector<8x64xf32>
    %34 = arith.mulf %32, %33 : vector<8x64xf32>
    %35 = vector.broadcast %2 : vector<1x64xf32> to vector<8x64xf32>
    %36 = arith.addf %34, %35 : vector<8x64xf32>
    %cst_24 = arith.constant 0.000000e+00 : f32
    %37 = vector.broadcast %cst_24 : f32 to vector<8x64xf32>
    %38 = arith.maximumf %36, %37 : vector<8x64xf32>
    %c0_25 = arith.constant 0 : index
    %c0_26 = arith.constant 0 : index
    %39 = vector.load %arg4[%c0_25, %c0_26] : memref<64x32xf32, #tpu.memory_space<vmem>>, vector<64x32xf32>
    %cst_27 = arith.constant dense<0.000000e+00> : vector<8x32xf32>
    %40 = tpu.matmul %38, %39, %cst_27 {dimension_numbers = #tpu.dot_dimension_numbers<[1], [0], [0], [1], [0, 0, 1, 1], [], []>} : vector<8x64xf32>, vector<64x32xf32>, vector<8x32xf32> -> vector<8x32xf32>
    %41 = vector.broadcast %3 : vector<1x32xf32> to vector<8x32xf32>
    %42 = arith.addf %40, %41 : vector<8x32xf32>
    %cst_28 = arith.constant dense<0.000000e+00> : vector<8xf32>
    %43 = vector.multi_reduction <add>, %42, %cst_28 [1] : vector<8x32xf32> to vector<8xf32>
    %44 = vector.shape_cast %43 : vector<8xf32> to vector<8x1xf32>
    %cst_29 = arith.constant 3.200000e+01 : f32
    %45 = vector.broadcast %cst_29 : f32 to vector<8x1xf32>
    %46 = arith.divf %44, %45 : vector<8x1xf32>
    %47 = vector.broadcast %46 : vector<8x1xf32> to vector<8x32xf32>
    %48 = arith.subf %42, %47 : vector<8x32xf32>
    %49 = arith.mulf %48, %48 : vector<8x32xf32>
    %cst_30 = arith.constant dense<0.000000e+00> : vector<8xf32>
    %50 = vector.multi_reduction <add>, %49, %cst_30 [1] : vector<8x32xf32> to vector<8xf32>
    %51 = vector.shape_cast %50 : vector<8xf32> to vector<8x1xf32>
    %cst_31 = arith.constant 3.200000e+01 : f32
    %52 = vector.broadcast %cst_31 : f32 to vector<8x1xf32>
    %53 = arith.divf %51, %52 : vector<8x1xf32>
    %cst_32 = arith.constant 9.99999974E-6 : f32
    %54 = vector.broadcast %cst_32 : f32 to vector<8x1xf32>
    %55 = arith.addf %53, %54 : vector<8x1xf32>
    %56 = math.rsqrt %55 : vector<8x1xf32>
    %57 = vector.broadcast %56 : vector<8x1xf32> to vector<8x32xf32>
    %58 = arith.mulf %48, %57 : vector<8x32xf32>
    %59 = vector.broadcast %4 : vector<1x32xf32> to vector<8x32xf32>
    %60 = arith.mulf %58, %59 : vector<8x32xf32>
    %61 = vector.broadcast %5 : vector<1x32xf32> to vector<8x32xf32>
    %62 = arith.addf %60, %61 : vector<8x32xf32>
    %c0_33 = arith.constant 0 : index
    %c0_34 = arith.constant 0 : index
    %63 = vector.load %arg5[%c0_33, %c0_34] : memref<4x32xf32, #tpu.memory_space<vmem>>, vector<4x32xf32>
    %cst_35 = arith.constant dense<0.000000e+00> : vector<8x32xf32>
    %64 = tpu.matmul %12, %63, %cst_35 {dimension_numbers = #tpu.dot_dimension_numbers<[1], [0], [0], [1], [0, 0, 1, 1], [], []>} : vector<8x4xf32>, vector<4x32xf32>, vector<8x32xf32> -> vector<8x32xf32>
    %65 = vector.broadcast %6 : vector<1x32xf32> to vector<8x32xf32>
    %66 = arith.addf %64, %65 : vector<8x32xf32>
    %cst_36 = arith.constant 0.000000e+00 : f32
    %67 = vector.broadcast %cst_36 : f32 to vector<8x32xf32>
    %68 = arith.maximumf %66, %67 : vector<8x32xf32>
    %69 = arith.addf %62, %68 : vector<8x32xf32>
    %cst_37 = arith.constant 0.000000e+00 : f32
    %70 = vector.broadcast %cst_37 : f32 to vector<8x32xf32>
    %71 = arith.maximumf %69, %70 : vector<8x32xf32>
    %72 = vector.broadcast %7 : vector<1x32xf32> to vector<8x32xf32>
    %73 = arith.mulf %71, %72 : vector<8x32xf32>
    %cst_38 = arith.constant dense<0.000000e+00> : vector<8xf32>
    %74 = vector.multi_reduction <add>, %73, %cst_38 [1] : vector<8x32xf32> to vector<8xf32>
    %75 = vector.shape_cast %74 : vector<8xf32> to vector<8x1xf32>
    %76 = vector.broadcast %10 : vector<1x1xf32> to vector<8x1xf32>
    %77 = arith.addf %75, %76 : vector<8x1xf32>
    %c0_39 = arith.constant 0 : index
    %c0_40 = arith.constant 0 : index
    %78 = vector.load %arg8[%c0_39, %c0_40] : memref<8x1xf32, #tpu.memory_space<vmem>>, vector<8x1xf32>
    tpu.vector_store %arg8[%c0_39, %c0_40], %77 {strides = array<i32>} : memref<8x1xf32, #tpu.memory_space<vmem>>, vector<8x1xf32>,
    return
  }
  func.func @transform_0(%arg0: i32) -> (i32, i32) {
    %c0_i32 = arith.constant 0 : i32
    %c0_i32_0 = arith.constant 0 : i32
    return %arg0, %c0_i32 : i32, i32
  }
  func.func @transform_1(%arg0: i32) -> (i32, i32) {
    %c0_i32 = arith.constant 0 : i32
    %c0_i32_0 = arith.constant 0 : i32
    return %arg0, %c0_i32 : i32, i32
  }
  func.func @transform_2(%arg0: i32) -> (i32, i32) {
    %c0_i32 = arith.constant 0 : i32
    %c0_i32_0 = arith.constant 0 : i32
    %c0_i32_1 = arith.constant 0 : i32
    return %c0_i32, %c0_i32_0 : i32, i32
  }
  func.func @transform_3(%arg0: i32) -> (i32, i32) {
    %c0_i32 = arith.constant 0 : i32
    %c0_i32_0 = arith.constant 0 : i32
    %c0_i32_1 = arith.constant 0 : i32
    return %c0_i32, %c0_i32_0 : i32, i32
  }
  func.func @transform_4(%arg0: i32) -> (i32, i32) {
    %c0_i32 = arith.constant 0 : i32
    %c0_i32_0 = arith.constant 0 : i32
    %c0_i32_1 = arith.constant 0 : i32
    return %c0_i32, %c0_i32_0 : i32, i32
  }
  func.func @transform_5(%arg0: i32) -> (i32, i32) {
    %c0_i32 = arith.constant 0 : i32
    %c0_i32_0 = arith.constant 0 : i32
    %c0_i32_1 = arith.constant 0 : i32
    return %c0_i32, %c0_i32_0 : i32, i32
  }
  func.func @transform_6(%arg0: i32) -> (i32, i32) {
    %c0_i32 = arith.constant 0 : i32
    %c0_i32_0 = arith.constant 0 : i32
    %c0_i32_1 = arith.constant 0 : i32
    return %c0_i32, %c0_i32_0 : i32, i32
  }
  func.func @transform_7(%arg0: i32) -> (i32, i32) {
    %c0_i32 = arith.constant 0 : i32
    %c0_i32_0 = arith.constant 0 : i32
    return %arg0, %c0_i32 : i32, i32
  }
}

</mosaic_0001>

<llo_original>
// kernel: tpu_custom_call.1
$region0: #{tpu_custom_call.1}
  #allocation0 [shape = 'u32[]', space=smem, size = 0x4, offset = 0x4, fixed_abs, tag = 'smem constant byte address 0x4 - core index']
  #allocation1 [shape = 'u32[144,128]{1,0:T(1,128)}', space=vmem, size = 0x12000, scoped, tag = 'internal scratch']
  %s0 = inlined_call_operand.vmem [shape: f32[8,16], index: 0, kind: input, shape index: {}]
  %s1 = inlined_call_operand.vmem [shape: f32[8,4], index: 1, kind: input, shape index: {}]
  %s2 = inlined_call_operand.vmem [shape: f32[16,64], index: 2, kind: input, shape index: {}]
  %s3 = inlined_call_operand.vmem [shape: f32[64,32], index: 3, kind: input, shape index: {}]
  %s4 = inlined_call_operand.vmem [shape: f32[4,32], index: 4, kind: input, shape index: {}]
  %s5 = inlined_call_operand.vmem [shape: f32[3,64], index: 5, kind: input, shape index: {}]
  %s6 = inlined_call_operand.vmem [shape: f32[6,32], index: 6, kind: input, shape index: {}]
  %s7 = inlined_call_operand.vmem [shape: f32[8,1], index: 7, kind: output, shape index: {}]
  %s8 = sld [smem:[#allocation0]]
  $region38: #{tpu_custom_call.1} parent=0
    _
  %s10 = ssub.s32 1, %s8
  %s11 = scalar_select 0, %s10, %s8
  // Predicated region
  $region2: #{tpu_custom_call.1} parent=0 // pred_check
    _
  $region3: #{tpu_custom_call.1} parent=0 // pred_check_branch
    %13 = sbr.rel (0) target = $region5
  $region4: #{tpu_custom_call.1} parent=0 // pred_region
    _
  $region5: #{tpu_custom_call.1} parent=0 // pred_fallthru
    _
  // Predicated region
  $region6: #{tpu_custom_call.1} parent=0 // pred_check
    _
  $region7: #{tpu_custom_call.1} parent=0 // pred_check_branch
    %15 = sbr.rel (0) target = $region9
  $region8: #{tpu_custom_call.1} parent=0 // pred_region
    _
  $region9: #{tpu_custom_call.1} parent=0 // pred_fallthru
    _
  // Predicated region
  $region10: #{tpu_custom_call.1} parent=0 // pred_check
    _
  $region11: #{tpu_custom_call.1} parent=0 // pred_check_branch
    %17 = sbr.rel (0) target = $region13
  $region12: #{tpu_custom_call.1} parent=0 // pred_region
    _
  $region13: #{tpu_custom_call.1} parent=0 // pred_fallthru
    _
  // Predicated region
  $region14: #{tpu_custom_call.1} parent=0 // pred_check
    _
  $region15: #{tpu_custom_call.1} parent=0 // pred_check_branch
    %19 = sbr.rel (0) target = $region17
  $region16: #{tpu_custom_call.1} parent=0 // pred_region
    _
  $region17: #{tpu_custom_call.1} parent=0 // pred_fallthru
    _
  // Predicated region
  $region18: #{tpu_custom_call.1} parent=0 // pred_check
    _
  $region19: #{tpu_custom_call.1} parent=0 // pred_check_branch
    %21 = sbr.rel (0) target = $region21
  $region20: #{tpu_custom_call.1} parent=0 // pred_region
    _
  $region21: #{tpu_custom_call.1} parent=0 // pred_fallthru
    _
  // Predicated region
  $region22: #{tpu_custom_call.1} parent=0 // pred_check
    _
  $region23: #{tpu_custom_call.1} parent=0 // pred_check_branch
    %23 = sbr.rel (0) target = $region25
  $region24: #{tpu_custom_call.1} parent=0 // pred_region
    _
  $region25: #{tpu_custom_call.1} parent=0 // pred_fallthru
    _
  // Predicated region
  $region26: #{tpu_custom_call.1} parent=0 // pred_check
    _
  $region27: #{tpu_custom_call.1} parent=0 // pred_check_branch
    %25 = sbr.rel (0) target = $region29
  $region28: #{tpu_custom_call.1} parent=0 // pred_region
    _
  $region29: #{tpu_custom_call.1} parent=0 // pred_fallthru
    _
  %v26 = vld [vmem:[%s5] sm:$0x1]
  %v27 = vld [vmem:[%s5 + $0x1] sm:$0x1]
  %v28 = vld [vmem:[%s5 + $0x2] sm:$0x1]
  %v29 = vld [vmem:[%s6] sm:$0x1]
  %v30 = vld [vmem:[%s6 + $0x1] sm:$0x1]
  %v31 = vld [vmem:[%s6 + $0x2] sm:$0x1]
  %v32 = vld [vmem:[%s6 + $0x3] sm:$0x1]
  %v33 = vld [vmem:[%s6 + $0x4] sm:$0x1]
  %v34 = vld [vmem:[%s6 + $0x5] sm:$0x1]
  %vm35 = vcmask 253952
  %v36 = vsel %vm35, %v34, 0.0
  %37 = vadd.xlane.f32.xlu0 %v36
  %v38 = vpop.xlane.xlu0 %37
  %v39 = vld [vmem:[%s0] sm:$0xff]
  %v40 = vld [vmem:[%s1] sm:$0xff]
  %v41 = vld [vmem:[%s2] sm:$0xff]
  %v42 = vld [vmem:[%s2 + $0x8] sm:$0xff]
  %v43 = vlaneseq
  %v44 = vshrl.u32 %v43, 7
  %v45 = vsub.s32 0, %v44
  %v46 = vrot.slane %v26, %v45
  %vm47 = vcmask 130048
  %v49 = vsel %vm47, %v39, 0
  %51 = vmatprep.subr.mxu0 0.0
  %52 = vmatpush1.msra.mxu0 %v41
  %53 = vmatprep.subr.mxu0 0.0
  %54 = vmatpush1.msra.mxu0 %v42
  %55 = vmatprep.subr.mxu0 0.0
  %56 = vmatpush1.msra.mxu0 0.0
  %57 = vmatprep.subr.mxu0 0.0
  %58 = vmatpush1.msra.mxu0 0.0
  %59 = vmatprep.subr.mxu0 0.0
  %60 = vmatpush1.msra.mxu0 0.0
  %61 = vmatprep.subr.mxu0 0.0
  %62 = vmatpush1.msra.mxu0 0.0
  %63 = vmatprep.subr.mxu0 0.0
  %64 = vmatpush1.msra.mxu0 0.0
  %65 = vmatprep.subr.mxu0 0.0
  %66 = vmatpush1.msra.mxu0 0.0
  %67 = vmatprep.subr.mxu0 0.0
  %68 = vmatpush1.msra.mxu0 0.0
  %69 = vmatprep.subr.mxu0 0.0
  %70 = vmatpush1.msra.mxu0 0.0
  %71 = vmatprep.subr.mxu0 0.0
  %72 = vmatpush1.msra.mxu0 0.0
  %73 = vmatprep.subr.mxu0 0.0
  %74 = vmatpush1.msra.mxu0 0.0
  %75 = vmatprep.subr.mxu0 0.0
  %76 = vmatpush1.msra.mxu0 0.0
  %77 = vmatprep.subr.mxu0 0.0
  %78 = vmatpush1.msra.mxu0 0.0
  %79 = vmatprep.subr.mxu0 0.0
  %80 = vmatpush1.msra.mxu0 0.0
  %81 = vmatprep.subr.mxu0 0.0
  %82 = vmatpush1.msra.mxu0 0.0
  %83 = vmatprep.subr.mxu0 0.0
  %84 = vmatpush1.msra.mxu0 0.0
  %85 = vmatprep.subr.mxu0 0.0
  %86 = vmatpush1.msra.mxu0 0.0
  %87 = vmatprep.subr.mxu0 0.0
  %88 = vmatpush1.msra.mxu0 0.0
  %89 = vmatprep.subr.mxu0 0.0
  %90 = vmatpush1.msra.mxu0 0.0
  %91 = vmatprep.subr.mxu0 0.0
  %92 = vmatpush1.msra.mxu0 0.0
  %93 = vmatprep.subr.mxu0 0.0
  %94 = vmatpush1.msra.mxu0 0.0
  %95 = vmatprep.subr.mxu0 0.0
  %96 = vmatpush1.msra.mxu0 0.0
  %97 = vmatprep.subr.mxu0 0.0
  %98 = vmatpush1.msra.mxu0 0.0
  %99 = vmatprep.subr.mxu0 0.0
  %100 = vmatpush1.msra.mxu0 0.0
  %101 = vmatprep.subr.mxu0 0.0
  %102 = vmatpush1.msra.mxu0 0.0
  %103 = vmatprep.subr.mxu0 0.0
  %104 = vmatpush1.msra.mxu0 0.0
  %105 = vmatprep.subr.mxu0 0.0
  %106 = vmatpush1.msra.mxu0 0.0
  %107 = vmatprep.subr.mxu0 0.0
  %108 = vmatpush1.msra.mxu0 0.0
  %109 = vmatprep.subr.mxu0 0.0
  %110 = vmatpush1.msra.mxu0 0.0
  %111 = vmatprep.subr.mxu0 0.0
  %112 = vmatpush1.msra.mxu0 0.0
  %113 = vmatprep.subr.mxu0 0.0
  %114 = vmatpush1.msra.mxu0 0.0
  %115 = vmatprep.mubr.f32.mxu0 0.0
  %116 = vmatmul.mubr.f32.gmra.mrb[0].mxu0 %v49
  %v117 = vpop.f32.mrb[0].mxu0
  %v118 = vadd.f32 %v46, %v117
  %v119 = vpop.f32.mrb[0].mxu0
  %120 = vdwg.mxu0
  %vm121 = vcmask 523264
  %v122 = vsel %vm121, %v118, 0.0
  %123 = vadd.xlane.f32.xlu0 %v122
  %v124 = vpop.xlane.xlu0 %123
  %v125 = vrcp.pop 64.0
  %v126 = vmul.f32 %v124, %v125
  %v127 = vsub.f32 %v118, %v126
  %v128 = vmul.f32 %v127, %v127
  %v129 = vsel %vm121, %v128, 0.0
  %130 = vadd.xlane.f32.xlu0 %v129
  %v131 = vpop.xlane.xlu0 %130
  %v132 = vmul.f32 %v131, %v125
  %v133 = vadd.f32 %v132, 1e-05
  %v134 = vrsqrt.pop %v133
  %v135 = vmul.f32 %v127, %v134
  %v136 = vlaneseq
  %v137 = vshrl.u32 %v136, 7
  %v138 = vsub.s32 0, %v137
  %v139 = vrot.slane %v27, %v138
  %v140 = vmul.f32 %v135, %v139
  %v141 = vlaneseq
  %v142 = vshrl.u32 %v141, 7
  %v143 = vsub.s32 0, %v142
  %v144 = vrot.slane %v28, %v143
  %v145 = vadd.f32 %v140, %v144
  %v146 = vmax.f32 %v145, 0.0
  %v147 = vld [vmem:[%s3] sm:$0xff]
  %v148 = vld [vmem:[%s3 + $0x8] sm:$0xff]
  %v149 = vld [vmem:[%s3 + $0x10] sm:$0xff]
  %v150 = vld [vmem:[%s3 + $0x18] sm:$0xff]
  %v151 = vld [vmem:[%s3 + $0x20] sm:$0xff]
  %v152 = vld [vmem:[%s3 + $0x28] sm:$0xff]
  %v153 = vld [vmem:[%s3 + $0x30] sm:$0xff]
  %v154 = vld [vmem:[%s3 + $0x38] sm:$0xff]
  %v155 = vlaneseq
  %v156 = vshrl.u32 %v155, 7
  %v157 = vsub.s32 0, %v156
  %v158 = vrot.slane %v29, %v157
  %v160 = vsel %vm121, %v146, 0
  %162 = vmatprep.subr.mxu0 0.0
  %163 = vmatpush1.msra.mxu0 %v147
  %164 = vmatprep.subr.mxu0 0.0
  %165 = vmatpush1.msra.mxu0 %v148
  %166 = vmatprep.subr.mxu0 0.0
  %167 = vmatpush1.msra.mxu0 %v149
  %168 = vmatprep.subr.mxu0 0.0
  %169 = vmatpush1.msra.mxu0 %v150
  %170 = vmatprep.subr.mxu0 0.0
  %171 = vmatpush1.msra.mxu0 %v151
  %172 = vmatprep.subr.mxu0 0.0
  %173 = vmatpush1.msra.mxu0 %v152
  %174 = vmatprep.subr.mxu0 0.0
  %175 = vmatpush1.msra.mxu0 %v153
  %176 = vmatprep.subr.mxu0 0.0
  %177 = vmatpush1.msra.mxu0 %v154
  %178 = vmatprep.subr.mxu0 0.0
  %179 = vmatpush1.msra.mxu0 0.0
  %180 = vmatprep.subr.mxu0 0.0
  %181 = vmatpush1.msra.mxu0 0.0
  %182 = vmatprep.subr.mxu0 0.0
  %183 = vmatpush1.msra.mxu0 0.0
  %184 = vmatprep.subr.mxu0 0.0
  %185 = vmatpush1.msra.mxu0 0.0
  %186 = vmatprep.subr.mxu0 0.0
  %187 = vmatpush1.msra.mxu0 0.0
  %188 = vmatprep.subr.mxu0 0.0
  %189 = vmatpush1.msra.mxu0 0.0
  %190 = vmatprep.subr.mxu0 0.0
  %191 = vmatpush1.msra.mxu0 0.0
  %192 = vmatprep.subr.mxu0 0.0
  %193 = vmatpush1.msra.mxu0 0.0
  %194 = vmatprep.subr.mxu0 0.0
  %195 = vmatpush1.msra.mxu0 0.0
  %196 = vmatprep.subr.mxu0 0.0
  %197 = vmatpush1.msra.mxu0 0.0
  %198 = vmatprep.subr.mxu0 0.0
  %199 = vmatpush1.msra.mxu0 0.0
  %200 = vmatprep.subr.mxu0 0.0
  %201 = vmatpush1.msra.mxu0 0.0
  %202 = vmatprep.subr.mxu0 0.0
  %203 = vmatpush1.msra.mxu0 0.0
  %204 = vmatprep.subr.mxu0 0.0
  %205 = vmatpush1.msra.mxu0 0.0
  %206 = vmatprep.subr.mxu0 0.0
  %207 = vmatpush1.msra.mxu0 0.0
  %208 = vmatprep.subr.mxu0 0.0
  %209 = vmatpush1.msra.mxu0 0.0
  %210 = vmatprep.subr.mxu0 0.0
  %211 = vmatpush1.msra.mxu0 0.0
  %212 = vmatprep.subr.mxu0 0.0
  %213 = vmatpush1.msra.mxu0 0.0
  %214 = vmatprep.subr.mxu0 0.0
  %215 = vmatpush1.msra.mxu0 0.0
  %216 = vmatprep.subr.mxu0 0.0
  %217 = vmatpush1.msra.mxu0 0.0
  %218 = vmatprep.subr.mxu0 0.0
  %219 = vmatpush1.msra.mxu0 0.0
  %220 = vmatprep.subr.mxu0 0.0
  %221 = vmatpush1.msra.mxu0 0.0
  %222 = vmatprep.subr.mxu0 0.0
  %223 = vmatpush1.msra.mxu0 0.0
  %224 = vmatprep.subr.mxu0 0.0
  %225 = vmatpush1.msra.mxu0 0.0
  %226 = vmatprep.mubr.f32.mxu0 0.0
  %227 = vmatmul.mubr.f32.gmra.mrb[0].mxu0 %v160
  %v228 = vpop.f32.mrb[0].mxu0
  %v229 = vadd.f32 %v158, %v228
  %v230 = vpop.f32.mrb[0].mxu0
  %231 = vdwg.mxu0
  %vm232 = vcmask 261120
  %v233 = vsel %vm232, %v229, 0.0
  %234 = vadd.xlane.f32.xlu0 %v233
  %v235 = vpop.xlane.xlu0 %234
  %v236 = vrcp.pop 32.0
  %v237 = vmul.f32 %v235, %v236
  %v238 = vsub.f32 %v229, %v237
  %v239 = vmul.f32 %v238, %v238
  %v240 = vsel %vm232, %v239, 0.0
  %241 = vadd.xlane.f32.xlu0 %v240
  %v242 = vpop.xlane.xlu0 %241
  %v243 = vmul.f32 %v242, %v236
  %v244 = vadd.f32 %v243, 1e-05
  %v245 = vrsqrt.pop %v244
  %v246 = vmul.f32 %v238, %v245
  %v247 = vlaneseq
  %v248 = vshrl.u32 %v247, 7
  %v249 = vsub.s32 0, %v248
  %v250 = vrot.slane %v30, %v249
  %v251 = vmul.f32 %v246, %v250
  %v252 = vlaneseq
  %v253 = vshrl.u32 %v252, 7
  %v254 = vsub.s32 0, %v253
  %v255 = vrot.slane %v31, %v254
  %v256 = vadd.f32 %v251, %v255
  %v257 = vld [vmem:[%s4] sm:$0xf]
  %v258 = vlaneseq
  %v259 = vshrl.u32 %v258, 7
  %v260 = vsub.s32 0, %v259
  %v261 = vrot.slane %v32, %v260
  %vm262 = vcmask 31744
  %v264 = vsel %vm262, %v40, 0
  %vm266 = vcmask 1043456
  %v268 = vsel %vm266, %v257, 0
  %270 = vmatprep.subr.mxu0 0.0
  %271 = vmatpush1.msra.mxu0 %v268
  %272 = vmatprep.subr.mxu0 0.0
  %273 = vmatpush1.msra.mxu0 0.0
  %274 = vmatprep.subr.mxu0 0.0
  %275 = vmatpush1.msra.mxu0 0.0
  %276 = vmatprep.subr.mxu0 0.0
  %277 = vmatpush1.msra.mxu0 0.0
  %278 = vmatprep.subr.mxu0 0.0
  %279 = vmatpush1.msra.mxu0 0.0
  %280 = vmatprep.subr.mxu0 0.0
  %281 = vmatpush1.msra.mxu0 0.0
  %282 = vmatprep.subr.mxu0 0.0
  %283 = vmatpush1.msra.mxu0 0.0
  %284 = vmatprep.subr.mxu0 0.0
  %285 = vmatpush1.msra.mxu0 0.0
  %286 = vmatprep.subr.mxu0 0.0
  %287 = vmatpush1.msra.mxu0 0.0
  %288 = vmatprep.subr.mxu0 0.0
  %289 = vmatpush1.msra.mxu0 0.0
  %290 = vmatprep.subr.mxu0 0.0
  %291 = vmatpush1.msra.mxu0 0.0
  %292 = vmatprep.subr.mxu0 0.0
  %293 = vmatpush1.msra.mxu0 0.0
  %294 = vmatprep.subr.mxu0 0.0
  %295 = vmatpush1.msra.mxu0 0.0
  %296 = vmatprep.subr.mxu0 0.0
  %297 = vmatpush1.msra.mxu0 0.0
  %298 = vmatprep.subr.mxu0 0.0
  %299 = vmatpush1.msra.mxu0 0.0
  %300 = vmatprep.subr.mxu0 0.0
  %301 = vmatpush1.msra.mxu0 0.0
  %302 = vmatprep.subr.mxu0 0.0
  %303 = vmatpush1.msra.mxu0 0.0
  %304 = vmatprep.subr.mxu0 0.0
  %305 = vmatpush1.msra.mxu0 0.0
  %306 = vmatprep.subr.mxu0 0.0
  %307 = vmatpush1.msra.mxu0 0.0
  %308 = vmatprep.subr.mxu0 0.0
  %309 = vmatpush1.msra.mxu0 0.0
  %310 = vmatprep.subr.mxu0 0.0
  %311 = vmatpush1.msra.mxu0 0.0
  %312 = vmatprep.subr.mxu0 0.0
  %313 = vmatpush1.msra.mxu0 0.0
  %314 = vmatprep.subr.mxu0 0.0
  %315 = vmatpush1.msra.mxu0 0.0
  %316 = vmatprep.subr.mxu0 0.0
  %317 = vmatpush1.msra.mxu0 0.0
  %318 = vmatprep.subr.mxu0 0.0
  %319 = vmatpush1.msra.mxu0 0.0
  %320 = vmatprep.subr.mxu0 0.0
  %321 = vmatpush1.msra.mxu0 0.0
  %322 = vmatprep.subr.mxu0 0.0
  %323 = vmatpush1.msra.mxu0 0.0
  %324 = vmatprep.subr.mxu0 0.0
  %325 = vmatpush1.msra.mxu0 0.0
  %326 = vmatprep.subr.mxu0 0.0
  %327 = vmatpush1.msra.mxu0 0.0
  %328 = vmatprep.subr.mxu0 0.0
  %329 = vmatpush1.msra.mxu0 0.0
  %330 = vmatprep.subr.mxu0 0.0
  %331 = vmatpush1.msra.mxu0 0.0
  %332 = vmatprep.subr.mxu0 0.0
  %333 = vmatpush1.msra.mxu0 0.0
  %334 = vmatprep.mubr.f32.mxu0 0.0
  %335 = vmatmul.mubr.f32.gmra.mrb[0].mxu0 %v264
  %v336 = vpop.f32.mrb[0].mxu0
  %v337 = vadd.f32 %v261, %v336
  %v338 = vpop.f32.mrb[0].mxu0
  %339 = vdwg.mxu0
  %v340 = vmax.f32 %v337, 0.0
  %v341 = vadd.f32 %v256, %v340
  %v342 = vmax.f32 %v341, 0.0
  %v343 = vlaneseq
  %v344 = vshrl.u32 %v343, 7
  %v345 = vsub.s32 0, %v344
  %v346 = vrot.slane %v33, %v345
  %v347 = vmul.f32 %v342, %v346
  %v348 = vsel %vm232, %v347, 0.0
  %349 = vadd.xlane.f32.xlu0 %v348
  %v350 = vpop.xlane.xlu0 %349
  %v351 = vlaneseq
  %v352 = vshrl.u32 %v351, 7
  %v353 = vsub.s32 0, %v352
  %v354 = vrot.slane %v38, %v353
  %v355 = vadd.f32 %v350, %v354
  %vm356 = vcmask 7168
  %357 = vst.msk [vmem:[%s7] sm:$0xff] %vm356, %v355
  // Predicated region
  $region30: #{tpu_custom_call.1} parent=0 // pred_check
    _
  $region31: #{tpu_custom_call.1} parent=0 // pred_check_branch
    %359 = sbr.rel (0) target = $region33
  $region32: #{tpu_custom_call.1} parent=0 // pred_region
    _
  $region33: #{tpu_custom_call.1} parent=0 // pred_fallthru
    _
  // Predicated region
  $region34: #{tpu_custom_call.1} parent=0 // pred_check
    _
  $region35: #{tpu_custom_call.1} parent=0 // pred_check_branch
    %361 = sbr.rel (0) target = $region37
  $region36: #{tpu_custom_call.1} parent=0 // pred_region
    _
  $region37: #{tpu_custom_call.1} parent=0 // pred_fallthru
    _

</llo_original>
